<compile_context>
chip_gen: v6e
topology: v6e:2x2x1
jax: 0.10.0
libtpu: 0.0.40
codegen_flags: <defaults>
</compile_context>

<pallas_src>
import functools

import numpy as np
import jax
import jax.numpy as jnp
from jax import lax
from jax.experimental import pallas as pl
from jax.experimental.pallas import tpu as pltpu

TRUNK = 3
MIN_VALUE = float(np.finfo(np.float32).min)
MXU_DTYPE = jnp.bfloat16   # MXU operand dtype; accumulation is always f32.


# ----------------------------------------------------------------------------
# Single fused kernel: encoders + attention + decoder MSE + fb target + BCE
#   grid = (B, tnum), tnum inner ("arbitrary"): scratch computed at tnum==0
#   persists for the remaining tnum iterations of the same batch element.
# ----------------------------------------------------------------------------
def _net_transform_kernel(ilens_ref,
                          xin_ref, xout_ref,
                          wq_ref, bq_ref, wk_ref, bk_ref, wd_ref, bd_ref,
                          loss_g_ref, loss_k_ref,
                          q_scr, tgt_scr,
                          *, scale):
    b = pl.program_id(0)
    t = pl.program_id(1)
    ilen = ilens_ref[b]

    x_out = xout_ref[0, 0]                                   # (T,F) f32
    tsz = x_out.shape[0]

    row = lax.broadcasted_iota(jnp.int32, (tsz, tsz), 0)
    col = lax.broadcasted_iota(jnp.int32, (tsz, tsz), 1)
    pad = (row >= ilen) | (col >= ilen)                      # seq_mask_kernel
    masked = pad | (row == col)                              # mask_diag=True

    # encoder_k: Linear + ReLU (VMEM-resident weights)
    k = jnp.maximum(
        jnp.dot(x_out.astype(MXU_DTYPE), wk_ref[...],
                preferred_element_type=jnp.float32) + bk_ref[...], 0.0)
    km = k.astype(MXU_DTYPE)

    # encoder_q is shared across the tnum axis: compute once per b, cache.
    @pl.when(t == 0)
    def _():
        x_in = xin_ref[0]                                     # (T,F)
        q_scr[...] = jnp.maximum(
            jnp.dot(x_in.astype(MXU_DTYPE), wq_ref[...],
                    preferred_element_type=jnp.float32) + bq_ref[...], 0.0)

    q = q_scr[...]                                            # (T,H) f32
    qm = q.astype(MXU_DTYPE)

    # attention (== attn(q, k, mask, mask_diag=True)); kernel_kq stays in VMEM
    score = lax.dot_general(km, qm, (((1,), (1,)), ((), ())),
                            preferred_element_type=jnp.float32) * scale
    score = jnp.where(masked, MIN_VALUE, score)
    mx = jnp.max(score, axis=-1, keepdims=True)
    ex = jnp.exp(score - mx)
    denom = jnp.sum(ex, axis=-1, keepdims=True)
    p = ex * pl.reciprocal(denom, approx=True)
    kernel = jnp.where(masked, 0.0, p)                        # kernel_kq

    # decoder Linear + masked MSE row sums -> loss_g partials
    agg = jnp.dot(kernel.astype(MXU_DTYPE), qm,
                  preferred_element_type=jnp.float32)         # agg_q (T,H)
    y = jnp.dot(agg.astype(MXU_DTYPE), wd_ref[...],
                preferred_element_type=jnp.float32) + bd_ref[...]   # (T,F)
    diff = y - x_out
    row_v = lax.broadcasted_iota(jnp.int32, (tsz, 1), 0)
    loss_g_ref[0, 0] = jnp.where(row_v >= ilen, 0.0,
                                 jnp.sum(diff * diff, axis=-1, keepdims=True))

    # fb() kernel_target from the tnum==0 attention kernel (torch no_grad path).
    #   energy_t = [1, kernel[0,1], kernel[1,2], ...]
    #   target[i,j] = prod_{r=j}^{i-1} energy_t[r] (j<i), 1 (j==i), 0 (j>i)
    @pl.when(t == 0)
    def _():
        superdiag = jnp.sum(jnp.where(col == row + 1, kernel, 0.0),
                            axis=0, keepdims=True)            # (1,T): kernel[j-1,j]
        lane = lax.broadcasted_iota(jnp.int32, (1, tsz), 1)
        e_row = jnp.where(lane == 0, 1.0, superdiag)          # energy_t (1,T)
        e_mat = jnp.broadcast_to(e_row, (tsz, tsz))
        s = jnp.where(col < row, e_mat, 1.0)                  # G[i,j]=e[j] if j<i else 1
        d = 1
        while d < tsz:                                        # Hillis-Steele suffix scan
            shifted = jnp.concatenate(
                [s[:, d:], jnp.ones((tsz, d), jnp.float32)], axis=1)
            s = s * shifted
            d *= 2
        tgt_scr[...] = jnp.where(col <= row, s, 0.0)

    # tril(k k^T) vs tril(target): BCEWithLogits + pad mask, row sums -> loss_k.
    # Strictly-upper triangle contributes BCE(0,0)=log(2) at unmasked positions,
    # exactly like the torch reference.
    kk = lax.dot_general(km, km, (((1,), (1,)), ((), ())),
                         preferred_element_type=jnp.float32)  # kernel_kk (T,T)
    x = jnp.where(col <= row, kk, 0.0)
    z = tgt_scr[...]
    bce = jnp.maximum(x, 0.0) - x * z + jnp.log1p(jnp.exp(-jnp.abs(x)))
    bce = jnp.where(pad, 0.0, bce)
    loss_k_ref[0, 0] = jnp.sum(bce, axis=-1, keepdims=True)


def fused_net_transform(ilens, xs_in, xs_out, wq, bq, wk, bk, wd, bd):
    B, tnum, t, f = xs_out.shape
    h = wq.shape[1]
    scale = 1.0 / float(np.sqrt(h))
    kern = functools.partial(_net_transform_kernel, scale=scale)
    return pl.pallas_call(
        kern,
        out_shape=(
            jax.ShapeDtypeStruct((B, tnum, t, 1), jnp.float32),   # loss_g row partials
            jax.ShapeDtypeStruct((B, tnum, t, 1), jnp.float32),   # loss_k row partials
        ),
        grid_spec=pltpu.PrefetchScalarGridSpec(
            num_scalar_prefetch=1,
            grid=(B, tnum),
            in_specs=[
                pl.BlockSpec((1, t, f), lambda b, tn, il: (b, 0, 0)),         # xs_in (q src)
                pl.BlockSpec((1, 1, t, f), lambda b, tn, il: (b, tn, 0, 0)),  # xs_out (k src / tgt)
                pl.BlockSpec((f, h), lambda b, tn, il: (0, 0)),               # Wq (resident)
                pl.BlockSpec((1, h), lambda b, tn, il: (0, 0)),               # bq
                pl.BlockSpec((f, h), lambda b, tn, il: (0, 0)),               # Wk
                pl.BlockSpec((1, h), lambda b, tn, il: (0, 0)),               # bk
                pl.BlockSpec((h, f), lambda b, tn, il: (0, 0)),               # Wd
                pl.BlockSpec((1, f), lambda b, tn, il: (0, 0)),               # bd
            ],
            out_specs=(
                pl.BlockSpec((1, 1, t, 1), lambda b, tn, il: (b, tn, 0, 0)),
                pl.BlockSpec((1, 1, t, 1), lambda b, tn, il: (b, tn, 0, 0)),
            ),
            scratch_shapes=[
                pltpu.VMEM((t, h), jnp.float32),   # q cache (per batch element)
                pltpu.VMEM((t, t), jnp.float32),   # fb() kernel_target cache
            ],
        ),
        compiler_params=pltpu.CompilerParams(
            dimension_semantics=("parallel", "arbitrary")),
    )(ilens, xs_in, xs_out, wq, bq, wk, bk, wd, bd)


# ----------------------------------------------------------------------------
# Forward pass (wrapper)
# ----------------------------------------------------------------------------
def net_transform_forward(params, xs_pad_in, xs_pad_out, ilens):
    B, Tmax, idim_full = xs_pad_in.shape
    tnum = xs_pad_out.shape[2]
    F = idim_full - TRUNK

    xs_in = xs_pad_in[:, :, :F]                                        # (B,T,F)
    xs_out = jnp.transpose(xs_pad_out[:, :, :, :F], (0, 2, 1, 3))      # (B,tnum,T,F)

    ilens_arr = jnp.asarray(ilens, jnp.int32)                          # (B,) SMEM prefetch

    wq = params["Wq"].astype(MXU_DTYPE)
    wk = params["Wk"].astype(MXU_DTYPE)
    wd = params["Wd"].astype(MXU_DTYPE)
    bq = params["bq"].reshape(1, -1)
    bk = params["bk"].reshape(1, -1)
    bd = params["bd"].reshape(1, -1)

    loss_g_rows, loss_k_rows = fused_net_transform(
        ilens_arr, xs_in, xs_out, wq, bq, wk, bk, wd, bd)

    return jnp.sum(loss_g_rows) + jnp.sum(loss_k_rows)


# ----------------------------------------------------------------------------
# Deterministic parameter init (synthetic weights, shapes from module __init__)
# ----------------------------------------------------------------------------
def init_params(key, f, h):
    k1, k2, k3, k4, k5, k6 = jax.random.split(key, 6)
    s = 0.1
    return {
        "Wq": jax.random.normal(k1, (f, h), jnp.float32) * s,
        "bq": jax.random.normal(k2, (h,), jnp.float32) * s,
        "Wk": jax.random.normal(k3, (f, h), jnp.float32) * s,
        "bk": jax.random.normal(k4, (h,), jnp.float32) * s,
        "Wd": jax.random.normal(k5, (h, f), jnp.float32) * s,
        "bd": jax.random.normal(k6, (f,), jnp.float32) * s,
    }


if __name__ == "__main__":
    key = jax.random.PRNGKey(0)
    B, tnum, Tmax, idim_full, hdim = 2, 1, 8, 19, 32   # F = idim_full - 3 = 16
    k_in, k_out, k_p = jax.random.split(key, 3)

    xs_pad_in = jax.random.normal(k_in, (B, Tmax, idim_full), jnp.float32)
    xs_pad_out = jax.random.normal(k_out, (B, Tmax, tnum, idim_full), jnp.float32)
    ilens = jnp.array([8, 6], dtype=jnp.int32)          # device array: no retrace per ilens

    params = init_params(k_p, idim_full - TRUNK, hdim)

    loss = jax.jit(net_transform_forward)(params, xs_pad_in, xs_pad_out, ilens)
    loss = jax.block_until_ready(loss)
    assert bool(jnp.isfinite(loss)), "loss is not finite"
    print("KERNEL_OK")
</pallas_src>

<mosaic_0001>
module attributes {stable_mosaic.version = 11 : i64} {
  func.func @_net_transform_kernel(%arg0: i32, %arg1: i32, %arg2: memref<2xi32, #tpu.memory_space<smem>>, %arg3: memref<1x8x16xf32, #tpu.memory_space<vmem>>, %arg4: memref<1x1x8x16xf32, #tpu.memory_space<vmem>>, %arg5: memref<16x32xbf16, #tpu.memory_space<vmem>>, %arg6: memref<1x32xf32, #tpu.memory_space<vmem>>, %arg7: memref<16x32xbf16, #tpu.memory_space<vmem>>, %arg8: memref<1x32xf32, #tpu.memory_space<vmem>>, %arg9: memref<32x16xbf16, #tpu.memory_space<vmem>>, %arg10: memref<1x16xf32, #tpu.memory_space<vmem>>, %arg11: memref<1x1x8x1xf32, #tpu.memory_space<vmem>>, %arg12: memref<1x1x8x1xf32, #tpu.memory_space<vmem>>, %arg13: memref<8x32xf32, #tpu.memory_space<vmem>>, %arg14: memref<8x8xf32, #tpu.memory_space<vmem>>) attributes {dimension_semantics = [#tpu.dimension_semantics<parallel>, #tpu.dimension_semantics<arbitrary>], iteration_bounds = array<i64: 2, 1>, scalar_prefetch = 1 : i64, scratch_operands = 2 : i64, tpu.core_type = #tpu.core_type<tc>, window_params = [{transform_indices = @transform_0, window_bounds = array<i64: 1, 8, 16>}, {transform_indices = @transform_1, window_bounds = array<i64: 1, 1, 8, 16>}, {pipeline_mode = #tpu.pipeline_mode<synchronous>, transform_indices = @transform_2, window_bounds = array<i64: 16, 32>}, {pipeline_mode = #tpu.pipeline_mode<synchronous>, transform_indices = @transform_3, window_bounds = array<i64: 1, 32>}, {pipeline_mode = #tpu.pipeline_mode<synchronous>, transform_indices = @transform_4, window_bounds = array<i64: 16, 32>}, {pipeline_mode = #tpu.pipeline_mode<synchronous>, transform_indices = @transform_5, window_bounds = array<i64: 1, 32>}, {pipeline_mode = #tpu.pipeline_mode<synchronous>, transform_indices = @transform_6, window_bounds = array<i64: 32, 16>}, {pipeline_mode = #tpu.pipeline_mode<synchronous>, transform_indices = @transform_7, window_bounds = array<i64: 1, 16>}, {transform_indices = @transform_8, window_bounds = array<i64: 1, 1, 8, 1>}, {transform_indices = @transform_9, window_bounds = array<i64: 1, 1, 8, 1>}]} {
    %0 = arith.index_cast %arg0 : i32 to index
    %1 = memref.load %arg2[%0] : memref<2xi32, #tpu.memory_space<smem>>
    %c0 = arith.constant 0 : index
    %c0_0 = arith.constant 0 : index
    %c0_1 = arith.constant 0 : index
    %c0_2 = arith.constant 0 : index
    %2 = vector.load %arg4[%c0, %c0_0, %c0_1, %c0_2] : memref<1x1x8x16xf32, #tpu.memory_space<vmem>>, vector<1x1x8x16xf32>
    %3 = vector.shape_cast %2 : vector<1x1x8x16xf32> to vector<8x16xf32>
    %4 = tpu.iota {dimensions = array<i32: 0>} : vector<8x8xi32>
    %5 = tpu.iota {dimensions = array<i32: 1>} : vector<8x8xi32>
    %6 = vector.broadcast %1 : i32 to vector<8x8xi32>
    %7 = arith.cmpi sge, %4, %6 : vector<8x8xi32>
    %8 = vector.broadcast %1 : i32 to vector<8x8xi32>
    %9 = arith.cmpi sge, %5, %8 : vector<8x8xi32>
    %10 = arith.ori %7, %9 : vector<8x8xi1>
    %11 = arith.cmpi eq, %4, %5 : vector<8x8xi32>
    %12 = arith.ori %10, %11 : vector<8x8xi1>
    %13 = arith.truncf %3 : vector<8x16xf32> to vector<8x16xbf16>
    %c0_3 = arith.constant 0 : index
    %c0_4 = arith.constant 0 : index
    %14 = vector.load %arg7[%c0_3, %c0_4] : memref<16x32xbf16, #tpu.memory_space<vmem>>, vector<16x32xbf16>
    %cst = arith.constant dense<0.000000e+00> : vector<8x32xf32>
    %15 = tpu.matmul %13, %14, %cst {dimension_numbers = #tpu.dot_dimension_numbers<[1], [0], [0], [1], [0, 0, 1, 1], [], []>} : vector<8x16xbf16>, vector<16x32xbf16>, vector<8x32xf32> -> vector<8x32xf32>
    %c0_5 = arith.constant 0 : index
    %c0_6 = arith.constant 0 : index
    %16 = vector.load %arg8[%c0_5, %c0_6] : memref<1x32xf32, #tpu.memory_space<vmem>>, vector<1x32xf32>
    %17 = vector.broadcast %16 : vector<1x32xf32> to vector<8x32xf32>
    %18 = arith.addf %15, %17 : vector<8x32xf32>
    %cst_7 = arith.constant 0.000000e+00 : f32
    %19 = vector.broadcast %cst_7 : f32 to vector<8x32xf32>
    %20 = arith.maximumf %18, %19 : vector<8x32xf32>
    %21 = arith.truncf %20 : vector<8x32xf32> to vector<8x32xbf16>
    %c0_i32 = arith.constant 0 : i32
    %22 = arith.cmpi eq, %arg1, %c0_i32 : i32
    %23 = arith.extui %22 : i1 to i32
    %c0_i32_8 = arith.constant 0 : i32
    %24 = arith.cmpi ne, %23, %c0_i32_8 : i32
    scf.if %24 {
      %c0_43 = arith.constant 0 : index
      %c0_44 = arith.constant 0 : index
      %c0_45 = arith.constant 0 : index
      %89 = vector.load %arg3[%c0_43, %c0_44, %c0_45] : memref<1x8x16xf32, #tpu.memory_space<vmem>>, vector<1x8x16xf32>
      %90 = vector.shape_cast %89 : vector<1x8x16xf32> to vector<8x16xf32>
      %91 = arith.truncf %90 : vector<8x16xf32> to vector<8x16xbf16>
      %c0_46 = arith.constant 0 : index
      %c0_47 = arith.constant 0 : index
      %92 = vector.load %arg5[%c0_46, %c0_47] : memref<16x32xbf16, #tpu.memory_space<vmem>>, vector<16x32xbf16>
      %cst_48 = arith.constant dense<0.000000e+00> : vector<8x32xf32>
      %93 = tpu.matmul %91, %92, %cst_48 {dimension_numbers = #tpu.dot_dimension_numbers<[1], [0], [0], [1], [0, 0, 1, 1], [], []>} : vector<8x16xbf16>, vector<16x32xbf16>, vector<8x32xf32> -> vector<8x32xf32>
      %c0_49 = arith.constant 0 : index
      %c0_50 = arith.constant 0 : index
      %94 = vector.load %arg6[%c0_49, %c0_50] : memref<1x32xf32, #tpu.memory_space<vmem>>, vector<1x32xf32>
      %95 = vector.broadcast %94 : vector<1x32xf32> to vector<8x32xf32>
      %96 = arith.addf %93, %95 : vector<8x32xf32>
      %cst_51 = arith.constant 0.000000e+00 : f32
      %97 = vector.broadcast %cst_51 : f32 to vector<8x32xf32>
      %98 = arith.maximumf %96, %97 : vector<8x32xf32>
      %c0_52 = arith.constant 0 : index
      %c0_53 = arith.constant 0 : index
      %99 = vector.load %arg13[%c0_52, %c0_53] : memref<8x32xf32, #tpu.memory_space<vmem>>, vector<8x32xf32>
      tpu.vector_store %arg13[%c0_52, %c0_53], %98 {strides = array<i32>} : memref<8x32xf32, #tpu.memory_space<vmem>>, vector<8x32xf32>,
    } else {
    }
    %c0_9 = arith.constant 0 : index
    %c0_10 = arith.constant 0 : index
    %25 = vector.load %arg13[%c0_9, %c0_10] : memref<8x32xf32, #tpu.memory_space<vmem>>, vector<8x32xf32>
    %26 = arith.truncf %25 : vector<8x32xf32> to vector<8x32xbf16>
    %cst_11 = arith.constant dense<0.000000e+00> : vector<8x8xf32>
    %27 = tpu.matmul %21, %26, %cst_11 {dimension_numbers = #tpu.dot_dimension_numbers<[1], [1], [0], [0], [0, 0, 1, 0], [], []>} : vector<8x32xbf16>, vector<8x32xbf16>, vector<8x8xf32> -> vector<8x8xf32>
    %cst_12 = arith.constant 0.176776692 : f32
    %28 = vector.broadcast %cst_12 : f32 to vector<8x8xf32>
    %29 = arith.mulf %27, %28 : vector<8x8xf32>
    %cst_13 = arith.constant -3.40282347E+38 : f32
    %30 = vector.broadcast %cst_13 : f32 to vector<8x8xf32>
    %31 = arith.select %12, %30, %29 : vector<8x8xi1>, vector<8x8xf32>
    %cst_14 = arith.constant dense<0xFF800000> : vector<8xf32>
    %32 = vector.multi_reduction <maximumf>, %31, %cst_14 [1] : vector<8x8xf32> to vector<8xf32>
    %33 = vector.shape_cast %32 : vector<8xf32> to vector<8x1xf32>
    %34 = vector.broadcast %33 : vector<8x1xf32> to vector<8x8xf32>
    %35 = arith.subf %31, %34 : vector<8x8xf32>
    %36 = math.exp %35 : vector<8x8xf32>
    %cst_15 = arith.constant dense<0.000000e+00> : vector<8xf32>
    %37 = vector.multi_reduction <add>, %36, %cst_15 [1] : vector<8x8xf32> to vector<8xf32>
    %38 = vector.shape_cast %37 : vector<8xf32> to vector<8x1xf32>
    %39 = tpu.reciprocal %38 {approx = true} : vector<8x1xf32> -> vector<8x1xf32>
    %40 = vector.broadcast %39 : vector<8x1xf32> to vector<8x8xf32>
    %41 = arith.mulf %36, %40 : vector<8x8xf32>
    %cst_16 = arith.constant 0.000000e+00 : f32
    %42 = vector.broadcast %cst_16 : f32 to vector<8x8xf32>
    %43 = arith.select %12, %42, %41 : vector<8x8xi1>, vector<8x8xf32>
    %44 = arith.truncf %43 : vector<8x8xf32> to vector<8x8xbf16>
    %cst_17 = arith.constant dense<0.000000e+00> : vector<8x32xf32>
    %45 = tpu.matmul %44, %26, %cst_17 {dimension_numbers = #tpu.dot_dimension_numbers<[1], [0], [0], [1], [0, 0, 1, 1], [], []>} : vector<8x8xbf16>, vector<8x32xbf16>, vector<8x32xf32> -> vector<8x32xf32>
    %46 = arith.truncf %45 : vector<8x32xf32> to vector<8x32xbf16>
    %c0_18 = arith.constant 0 : index
    %c0_19 = arith.constant 0 : index
    %47 = vector.load %arg9[%c0_18, %c0_19] : memref<32x16xbf16, #tpu.memory_space<vmem>>, vector<32x16xbf16>
    %cst_20 = arith.constant dense<0.000000e+00> : vector<8x16xf32>
    %48 = tpu.matmul %46, %47, %cst_20 {dimension_numbers = #tpu.dot_dimension_numbers<[1], [0], [0], [1], [0, 0, 1, 1], [], []>} : vector<8x32xbf16>, vector<32x16xbf16>, vector<8x16xf32> -> vector<8x16xf32>
    %c0_21 = arith.constant 0 : index
    %c0_22 = arith.constant 0 : index
    %49 = vector.load %arg10[%c0_21, %c0_22] : memref<1x16xf32, #tpu.memory_space<vmem>>, vector<1x16xf32>
    %50 = vector.broadcast %49 : vector<1x16xf32> to vector<8x16xf32>
    %51 = arith.addf %48, %50 : vector<8x16xf32>
    %52 = arith.subf %51, %3 : vector<8x16xf32>
    %53 = tpu.iota {dimensions = array<i32: 0>} : vector<8x1xi32>
    %54 = vector.broadcast %1 : i32 to vector<8x1xi32>
    %55 = arith.cmpi sge, %53, %54 : vector<8x1xi32>
    %56 = arith.mulf %52, %52 : vector<8x16xf32>
    %cst_23 = arith.constant dense<0.000000e+00> : vector<8xf32>
    %57 = vector.multi_reduction <add>, %56, %cst_23 [1] : vector<8x16xf32> to vector<8xf32>
    %58 = vector.shape_cast %57 : vector<8xf32> to vector<8x1xf32>
    %cst_24 = arith.constant 0.000000e+00 : f32
    %59 = vector.broadcast %cst_24 : f32 to vector<8x1xf32>
    %60 = arith.select %55, %59, %58 : vector<8x1xi1>, vector<8x1xf32>
    %c0_25 = arith.constant 0 : index
    %c0_26 = arith.constant 0 : index
    %c0_27 = arith.constant 0 : index
    %c0_28 = arith.constant 0 : index
    %61 = vector.load %arg11[%c0_25, %c0_26, %c0_27, %c0_28] : memref<1x1x8x1xf32, #tpu.memory_space<vmem>>, vector<1x1x8x1xf32>
    %62 = vector.shape_cast %61 : vector<1x1x8x1xf32> to vector<8x1xf32>
    %63 = vector.shape_cast %60 : vector<8x1xf32> to vector<1x1x8x1xf32>
    tpu.vector_store %arg11[%c0_25, %c0_26, %c0_27, %c0_28], %63 {strides = array<i32>} : memref<1x1x8x1xf32, #tpu.memory_space<vmem>>, vector<1x1x8x1xf32>,
    %c0_i32_29 = arith.constant 0 : i32
    %64 = arith.cmpi eq, %arg1, %c0_i32_29 : i32
    %65 = arith.extui %64 : i1 to i32
    %c0_i32_30 = arith.constant 0 : i32
    %66 = arith.cmpi ne, %65, %c0_i32_30 : i32
    scf.if %66 {
      %c1_i32 = arith.constant 1 : i32
      %89 = vector.broadcast %c1_i32 : i32 to vector<8x8xi32>
      %90 = arith.addi %4, %89 : vector<8x8xi32>
      %91 = arith.cmpi eq, %5, %90 : vector<8x8xi32>
      %cst_43 = arith.constant 0.000000e+00 : f32
      %92 = vector.broadcast %cst_43 : f32 to vector<8x8xf32>
      %93 = arith.select %91, %43, %92 : vector<8x8xi1>, vector<8x8xf32>
      %cst_44 = arith.constant dense<0.000000e+00> : vector<8xf32>
      %94 = vector.multi_reduction <add>, %93, %cst_44 [0] : vector<8x8xf32> to vector<8xf32>
      %95 = vector.shape_cast %94 : vector<8xf32> to vector<1x8xf32>
      %96 = tpu.iota {dimensions = array<i32: 1>} : vector<1x8xi32>
      %c0_i32_45 = arith.constant 0 : i32
      %97 = vector.broadcast %c0_i32_45 : i32 to vector<1x8xi32>
      %98 = arith.cmpi eq, %96, %97 : vector<1x8xi32>
      %cst_46 = arith.constant 1.000000e+00 : f32
      %99 = vector.broadcast %cst_46 : f32 to vector<1x8xf32>
      %100 = arith.select %98, %99, %95 : vector<1x8xi1>, vector<1x8xf32>
      %101 = vector.shape_cast %100 : vector<1x8xf32> to vector<1x8xf32>
      %102 = vector.broadcast %101 : vector<1x8xf32> to vector<8x8xf32>
      %103 = arith.cmpi slt, %5, %4 : vector<8x8xi32>
      %cst_47 = arith.constant 1.000000e+00 : f32
      %104 = vector.broadcast %cst_47 : f32 to vector<8x8xf32>
      %105 = arith.select %103, %102, %104 : vector<8x8xi1>, vector<8x8xf32>
      %106 = vector.extract_strided_slice %105 {offsets = [0, 1], sizes = [8, 7], strides = [1, 1]} : vector<8x8xf32> to vector<8x7xf32>
      %cst_48 = arith.constant 1.000000e+00 : f32
      %107 = vector.broadcast %cst_48 : f32 to vector<8x1xf32>
      %108 = tpu.concatenate %106, %107 in 1 : vector<8x7xf32>, vector<8x1xf32> -> vector<8x8xf32>
      %109 = arith.mulf %105, %108 : vector<8x8xf32>
      %110 = vector.extract_strided_slice %109 {offsets = [0, 2], sizes = [8, 6], strides = [1, 1]} : vector<8x8xf32> to vector<8x6xf32>
      %cst_49 = arith.constant 1.000000e+00 : f32
      %111 = vector.broadcast %cst_49 : f32 to vector<8x2xf32>
      %112 = tpu.concatenate %110, %111 in 1 : vector<8x6xf32>, vector<8x2xf32> -> vector<8x8xf32>
      %113 = arith.mulf %109, %112 : vector<8x8xf32>
      %114 = vector.extract_strided_slice %113 {offsets = [0, 4], sizes = [8, 4], strides = [1, 1]} : vector<8x8xf32> to vector<8x4xf32>
      %cst_50 = arith.constant 1.000000e+00 : f32
      %115 = vector.broadcast %cst_50 : f32 to vector<8x4xf32>
      %116 = tpu.concatenate %114, %115 in 1 : vector<8x4xf32>, vector<8x4xf32> -> vector<8x8xf32>
      %117 = arith.mulf %113, %116 : vector<8x8xf32>
      %118 = arith.cmpi sle, %5, %4 : vector<8x8xi32>
      %cst_51 = arith.constant 0.000000e+00 : f32
      %119 = vector.broadcast %cst_51 : f32 to vector<8x8xf32>
      %120 = arith.select %118, %117, %119 : vector<8x8xi1>, vector<8x8xf32>
      %c0_52 = arith.constant 0 : index
      %c0_53 = arith.constant 0 : index
      %121 = vector.load %arg14[%c0_52, %c0_53] : memref<8x8xf32, #tpu.memory_space<vmem>>, vector<8x8xf32>
      tpu.vector_store %arg14[%c0_52, %c0_53], %120 {strides = array<i32>} : memref<8x8xf32, #tpu.memory_space<vmem>>, vector<8x8xf32>,
    } else {
    }
    %cst_31 = arith.constant dense<0.000000e+00> : vector<8x8xf32>
    %67 = tpu.matmul %21, %21, %cst_31 {dimension_numbers = #tpu.dot_dimension_numbers<[1], [1], [0], [0], [0, 0, 1, 0], [], []>} : vector<8x32xbf16>, vector<8x32xbf16>, vector<8x8xf32> -> vector<8x8xf32>
    %68 = arith.cmpi sle, %5, %4 : vector<8x8xi32>
    %cst_32 = arith.constant 0.000000e+00 : f32
    %69 = vector.broadcast %cst_32 : f32 to vector<8x8xf32>
    %70 = arith.select %68, %67, %69 : vector<8x8xi1>, vector<8x8xf32>
    %c0_33 = arith.constant 0 : index
    %c0_34 = arith.constant 0 : index
    %71 = vector.load %arg14[%c0_33, %c0_34] : memref<8x8xf32, #tpu.memory_space<vmem>>, vector<8x8xf32>
    %cst_35 = arith.constant 0.000000e+00 : f32
    %72 = vector.broadcast %cst_35 : f32 to vector<8x8xf32>
    %73 = arith.maximumf %70, %72 : vector<8x8xf32>
    %74 = arith.mulf %70, %71 : vector<8x8xf32>
    %75 = arith.subf %73, %74 : vector<8x8xf32>
    %76 = math.absf %70 : vector<8x8xf32>
    %cst_36 = arith.constant 0.000000e+00 : f32
    %77 = vector.broadcast %cst_36 : f32 to vector<8x8xf32>
    %78 = arith.subf %77, %76 : vector<8x8xf32>
    %79 = math.exp %78 : vector<8x8xf32>
    %80 = math.log1p %79 : vector<8x8xf32>
    %81 = arith.addf %75, %80 : vector<8x8xf32>
    %cst_37 = arith.constant 0.000000e+00 : f32
    %82 = vector.broadcast %cst_37 : f32 to vector<8x8xf32>
    %83 = arith.select %10, %82, %81 : vector<8x8xi1>, vector<8x8xf32>
    %cst_38 = arith.constant dense<0.000000e+00> : vector<8xf32>
    %84 = vector.multi_reduction <add>, %83, %cst_38 [1] : vector<8x8xf32> to vector<8xf32>
    %85 = vector.shape_cast %84 : vector<8xf32> to vector<8x1xf32>
    %c0_39 = arith.constant 0 : index
    %c0_40 = arith.constant 0 : index
    %c0_41 = arith.constant 0 : index
    %c0_42 = arith.constant 0 : index
    %86 = vector.load %arg12[%c0_39, %c0_40, %c0_41, %c0_42] : memref<1x1x8x1xf32, #tpu.memory_space<vmem>>, vector<1x1x8x1xf32>
    %87 = vector.shape_cast %86 : vector<1x1x8x1xf32> to vector<8x1xf32>
    %88 = vector.shape_cast %85 : vector<8x1xf32> to vector<1x1x8x1xf32>
    tpu.vector_store %arg12[%c0_39, %c0_40, %c0_41, %c0_42], %88 {strides = array<i32>} : memref<1x1x8x1xf32, #tpu.memory_space<vmem>>, vector<1x1x8x1xf32>,
    return
  }
  func.func @transform_0(%arg0: i32, %arg1: i32, %arg2: memref<2xi32, #tpu.memory_space<smem>>) -> (i32, i32, i32) {
    %c0_i32 = arith.constant 0 : i32
    %c0_i32_0 = arith.constant 0 : i32
    %c0_i32_1 = arith.constant 0 : i32
    return %arg0, %c0_i32, %c0_i32_0 : i32, i32, i32
  }
  func.func @transform_1(%arg0: i32, %arg1: i32, %arg2: memref<2xi32, #tpu.memory_space<smem>>) -> (i32, i32, i32, i32) {
    %c0_i32 = arith.constant 0 : i32
    %c0_i32_0 = arith.constant 0 : i32
    %c0_i32_1 = arith.constant 0 : i32
    return %arg0, %arg1, %c0_i32, %c0_i32_0 : i32, i32, i32, i32
  }
  func.func @transform_2(%arg0: i32, %arg1: i32, %arg2: memref<2xi32, #tpu.memory_space<smem>>) -> (i32, i32) {
    %c0_i32 = arith.constant 0 : i32
    %c0_i32_0 = arith.constant 0 : i32
    %c0_i32_1 = arith.constant 0 : i32
    return %c0_i32, %c0_i32_0 : i32, i32
  }
  func.func @transform_3(%arg0: i32, %arg1: i32, %arg2: memref<2xi32, #tpu.memory_space<smem>>) -> (i32, i32) {
    %c0_i32 = arith.constant 0 : i32
    %c0_i32_0 = arith.constant 0 : i32
    %c0_i32_1 = arith.constant 0 : i32
    return %c0_i32, %c0_i32_0 : i32, i32
  }
  func.func @transform_4(%arg0: i32, %arg1: i32, %arg2: memref<2xi32, #tpu.memory_space<smem>>) -> (i32, i32) {
    %c0_i32 = arith.constant 0 : i32
    %c0_i32_0 = arith.constant 0 : i32
    %c0_i32_1 = arith.constant 0 : i32
    return %c0_i32, %c0_i32_0 : i32, i32
  }
  func.func @transform_5(%arg0: i32, %arg1: i32, %arg2: memref<2xi32, #tpu.memory_space<smem>>) -> (i32, i32) {
    %c0_i32 = arith.constant 0 : i32
    %c0_i32_0 = arith.constant 0 : i32
    %c0_i32_1 = arith.constant 0 : i32
    return %c0_i32, %c0_i32_0 : i32, i32
  }
  func.func @transform_6(%arg0: i32, %arg1: i32, %arg2: memref<2xi32, #tpu.memory_space<smem>>) -> (i32, i32) {
    %c0_i32 = arith.constant 0 : i32
    %c0_i32_0 = arith.constant 0 : i32
    %c0_i32_1 = arith.constant 0 : i32
    return %c0_i32, %c0_i32_0 : i32, i32
  }
  func.func @transform_7(%arg0: i32, %arg1: i32, %arg2: memref<2xi32, #tpu.memory_space<smem>>) -> (i32, i32) {
    %c0_i32 = arith.constant 0 : i32
    %c0_i32_0 = arith.constant 0 : i32
    %c0_i32_1 = arith.constant 0 : i32
    return %c0_i32, %c0_i32_0 : i32, i32
  }
  func.func @transform_8(%arg0: i32, %arg1: i32, %arg2: memref<2xi32, #tpu.memory_space<smem>>) -> (i32, i32, i32, i32) {
    %c0_i32 = arith.constant 0 : i32
    %c0_i32_0 = arith.constant 0 : i32
    %c0_i32_1 = arith.constant 0 : i32
    return %arg0, %arg1, %c0_i32, %c0_i32_0 : i32, i32, i32, i32
  }
  func.func @transform_9(%arg0: i32, %arg1: i32, %arg2: memref<2xi32, #tpu.memory_space<smem>>) -> (i32, i32, i32, i32) {
    %c0_i32 = arith.constant 0 : i32
    %c0_i32_0 = arith.constant 0 : i32
    %c0_i32_1 = arith.constant 0 : i32
    return %arg0, %arg1, %c0_i32, %c0_i32_0 : i32, i32, i32, i32
  }
}

</mosaic_0001>

<llo_original>
// kernel: net_transform_forward.1
$region0: #{net_transform_forward.1}
  #allocation0 [shape = 'u32[]', space=smem, size = 0x4, offset = 0x4, fixed_abs, tag = 'smem constant byte address 0x4 - core index']
  #allocation1 [shape = 'u32[144,128]{1,0:T(1,128)}', space=vmem, size = 0x12000, scoped, tag = 'internal scratch']
  #allocation2 [shape = 'f32[8,32]{1,0:T(8,128)}', space=vmem, size = 0x1000, scoped, tag = 'scratch operand']
  #allocation3 [shape = 'f32[8,8]{1,0:T(8,128)}', space=vmem, size = 0x1000, scoped, tag = 'scratch operand']
  #allocation4 [shape = 's32[1]{0}', space=sflag, size = 0x4, scoped, tag = 'scoped memory for net_transform_forward.1']
  #allocation5 [shape = 'u8[512]{0}', space=smem, size = 0x200, scoped, tag = 'prefetched SMEM operand 0']
  %s0 = inlined_call_operand.vmem [shape: s32[2], index: 0, kind: input, shape index: {}]
  %s1 = inlined_call_operand.vmem [shape: f32[2,8,16], index: 1, kind: input, shape index: {}]
  %s2 = inlined_call_operand.vmem [shape: f32[2,1,8,16], index: 2, kind: input, shape index: {}]
  %s3 = inlined_call_operand.vmem [shape: bf16[16,32], index: 3, kind: input, shape index: {}]
  %s4 = inlined_call_operand.vmem [shape: f32[1,32], index: 4, kind: input, shape index: {}]
  %s5 = inlined_call_operand.vmem [shape: bf16[16,32], index: 5, kind: input, shape index: {}]
  %s6 = inlined_call_operand.vmem [shape: f32[1,32], index: 6, kind: input, shape index: {}]
  %s7 = inlined_call_operand.vmem [shape: bf16[32,16], index: 7, kind: input, shape index: {}]
  %s8 = inlined_call_operand.vmem [shape: f32[1,16], index: 8, kind: input, shape index: {}]
  %s9 = inlined_call_operand.vmem [shape: f32[2,1,8,1], index: 9, kind: output, shape index: {0}]
  %s10 = inlined_call_operand.vmem [shape: f32[2,1,8,1], index: 10, kind: output, shape index: {1}]
  %11 = xla_tuple %s9, %s10
  %s12 = sld [smem:[#allocation0]]
  $region81: #{net_transform_forward.1} parent=0
    _
  %s14 = ssub.s32 1, %s12
  %s15 = scalar_select 0, %s14, %s12
  %s16 = sshll.u32 %s0, 4
  %s17 = int_to_ptr.vmem [resolvable:$true] %s16
  %19 = dma.vmem_to_smem %s17, 16, [#allocation5], [#allocation4]
  %20 = dma.done [#allocation4], 16
  %21 = sfence
  loop: start=0, step=1, limit=4
  $region2: #{net_transform_forward.1} parent=0 // loop_pre_header
    _
  $region3: #{net_transform_forward.1} parent=0 // loop_header
    %s23 = sphi 0, %s27
    %p24 = scmp.ge.s32.totalorder %s23, 4
    %s30 = sphi 0, %s42
    %s31 = sphi 0, %s38
    %s32 = sphi 0, %s30
    %s33 = sphi 0, %s31
    %s34 = sphi 0, %s32
    %s35 = sphi 0, %s33
    %s45 = sphi 0, %s47
    %s48 = sphi 0, %s45
    %s49 = sphi 0, %s48
    %s65 = sphi 0, %s49
    %s73 = sphi 0, %s75
    %s76 = sphi 0, %s73
    %s77 = sphi 0, %s76
    %s93 = sphi 0, %s77
    %s97 = sphi 0, %s97
    %s99 = sphi 0, %s97
    %s100 = sphi 0, %s99
    %s114 = sphi 0, %s100
    %s118 = sphi 0, %s118
    %s120 = sphi 0, %s118
    %s121 = sphi 0, %s120
    %s135 = sphi 0, %s121
    %s139 = sphi 0, %s139
    %s141 = sphi 0, %s139
    %s142 = sphi 0, %s141
    %s156 = sphi 0, %s142
    %s160 = sphi 0, %s160
    %s162 = sphi 0, %s160
    %s163 = sphi 0, %s162
    %s177 = sphi 0, %s163
    %s181 = sphi 0, %s181
    %s183 = sphi 0, %s181
    %s184 = sphi 0, %s183
    %s198 = sphi 0, %s184
    %s202 = sphi 0, %s202
    %s204 = sphi 0, %s202
    %s205 = sphi 0, %s204
    %s219 = sphi 0, %s205
    %s227 = sphi 0, %s229
    %s230 = sphi 0, %s227
    %s231 = sphi 0, %s230
    %s247 = sphi 0, %s231
    %s255 = sphi 0, %s257
    %s258 = sphi 0, %s255
    %s259 = sphi 0, %s258
    %s275 = sphi 0, %s259
  $region4: #{net_transform_forward.1} parent=0 // loop_header_branch
    %26 = sbr.rel (%p24) target = $region8
  $region5: #{net_transform_forward.1} parent=0 // loop_body
    %s28 = ssub.s32 %s23, 1
    %s29 = ssub.s32 %s23, 2
    %s36 = sadd.s32 1, %s31
    %p37 = scmp.ge.s32.totalorder %s36, 1
    %s38 = scalar_select %p37, 0, %s36
    %s39 = sadd.s32 1, %s30
    %s40 = scalar_select %p37, %s39, %s30
    %p41 = scmp.ge.s32.totalorder %s40, 2
    %s42 = scalar_select %p41, 0, %s40
    %s43 = ssub.s32 %s30, %s42
    %p44 = scmp.eq.s32.totalorder %s43, 0
    %s46 = sadd.s32 %s45, 1
    %s47 = scalar_select %p44, %s45, %s46
    %p50 = pneg %p44
    %p51 = scmp.eq.s32.totalorder %s23, 1
    %p52 = por %p50, %p51
    %p53 = scmp.ne.s32.totalorder %s45, %s48
    %p54 = scmp.eq.s32.totalorder %s23, 0
    %p55 = por %p53, %p54
    %p56 = scmp.ne.s32.totalorder %s45, %s48
    %p57 = scmp.eq.s32.totalorder %s28, 1
    %p58 = por %p56, %p57
    %p59 = scmp.ne.s32.totalorder %s48, %s49
    %p60 = scmp.eq.s32.totalorder %s28, 0
    %p61 = por %p59, %p60
    %p62 = scmp.ne.s32.totalorder %s48, %s49
    %p63 = scmp.eq.s32.totalorder %s29, 1
    %p64 = por %p62, %p63
    %p66 = scmp.ne.s32.totalorder %s49, %s65
    %p67 = scmp.eq.s32.totalorder %s29, 0
    %p68 = por %p66, %p67
    %s69 = ssub.s32 %s30, %s42
    %s70 = ssub.s32 %s31, %s38
    %s71 = sor.u32 %s69, %s70
    %p72 = scmp.eq.s32.totalorder %s71, 0
    %s74 = sadd.s32 %s73, 1
    %s75 = scalar_select %p72, %s73, %s74
    %p78 = pneg %p72
    %p79 = scmp.eq.s32.totalorder %s23, 1
    %p80 = por %p78, %p79
    %p81 = scmp.ne.s32.totalorder %s73, %s76
    %p82 = scmp.eq.s32.totalorder %s23, 0
    %p83 = por %p81, %p82
    %p84 = scmp.ne.s32.totalorder %s73, %s76
    %p85 = scmp.eq.s32.totalorder %s28, 1
    %p86 = por %p84, %p85
    %p87 = scmp.ne.s32.totalorder %s76, %s77
    %p88 = scmp.eq.s32.totalorder %s28, 0
    %p89 = por %p87, %p88
    %p90 = scmp.ne.s32.totalorder %s76, %s77
    %p91 = scmp.eq.s32.totalorder %s29, 1
    %p92 = por %p90, %p91
    %p94 = scmp.ne.s32.totalorder %s77, %s93
    %p95 = scmp.eq.s32.totalorder %s29, 0
    %p96 = por %p94, %p95
    %s98 = sadd.s32 %s97, 1
    %p101 = scmp.eq.s32.totalorder %s23, 1
    %p102 = scmp.ne.s32.totalorder %s97, %s99
    %p103 = scmp.eq.s32.totalorder %s23, 0
    %p104 = por %p102, %p103
    %p105 = scmp.ne.s32.totalorder %s97, %s99
    %p106 = scmp.eq.s32.totalorder %s28, 1
    %p107 = por %p105, %p106
    %p108 = scmp.ne.s32.totalorder %s99, %s100
    %p109 = scmp.eq.s32.totalorder %s28, 0
    %p110 = por %p108, %p109
    %p111 = scmp.ne.s32.totalorder %s99, %s100
    %p112 = scmp.eq.s32.totalorder %s29, 1
    %p113 = por %p111, %p112
    %p115 = scmp.ne.s32.totalorder %s100, %s114
    %p116 = scmp.eq.s32.totalorder %s29, 0
    %p117 = por %p115, %p116
    %s119 = sadd.s32 %s118, 1
    %p122 = scmp.eq.s32.totalorder %s23, 1
    %p123 = scmp.ne.s32.totalorder %s118, %s120
    %p124 = scmp.eq.s32.totalorder %s23, 0
    %p125 = por %p123, %p124
    %p126 = scmp.ne.s32.totalorder %s118, %s120
    %p127 = scmp.eq.s32.totalorder %s28, 1
    %p128 = por %p126, %p127
    %p129 = scmp.ne.s32.totalorder %s120, %s121
    %p130 = scmp.eq.s32.totalorder %s28, 0
    %p131 = por %p129, %p130
    %p132 = scmp.ne.s32.totalorder %s120, %s121
    %p133 = scmp.eq.s32.totalorder %s29, 1
    %p134 = por %p132, %p133
    %p136 = scmp.ne.s32.totalorder %s121, %s135
    %p137 = scmp.eq.s32.totalorder %s29, 0
    %p138 = por %p136, %p137
    %s140 = sadd.s32 %s139, 1
    %p143 = scmp.eq.s32.totalorder %s23, 1
    %p144 = scmp.ne.s32.totalorder %s139, %s141
    %p145 = scmp.eq.s32.totalorder %s23, 0
    %p146 = por %p144, %p145
    %p147 = scmp.ne.s32.totalorder %s139, %s141
    %p148 = scmp.eq.s32.totalorder %s28, 1
    %p149 = por %p147, %p148
    %p150 = scmp.ne.s32.totalorder %s141, %s142
    %p151 = scmp.eq.s32.totalorder %s28, 0
    %p152 = por %p150, %p151
    %p153 = scmp.ne.s32.totalorder %s141, %s142
    %p154 = scmp.eq.s32.totalorder %s29, 1
    %p155 = por %p153, %p154
    %p157 = scmp.ne.s32.totalorder %s142, %s156
    %p158 = scmp.eq.s32.totalorder %s29, 0
    %p159 = por %p157, %p158
    %s161 = sadd.s32 %s160, 1
    %p164 = scmp.eq.s32.totalorder %s23, 1
    %p165 = scmp.ne.s32.totalorder %s160, %s162
    %p166 = scmp.eq.s32.totalorder %s23, 0
    %p167 = por %p165, %p166
    %p168 = scmp.ne.s32.totalorder %s160, %s162
    %p169 = scmp.eq.s32.totalorder %s28, 1
    %p170 = por %p168, %p169
    %p171 = scmp.ne.s32.totalorder %s162, %s163
    %p172 = scmp.eq.s32.totalorder %s28, 0
    %p173 = por %p171, %p172
    %p174 = scmp.ne.s32.totalorder %s162, %s163
    %p175 = scmp.eq.s32.totalorder %s29, 1
    %p176 = por %p174, %p175
    %p178 = scmp.ne.s32.totalorder %s163, %s177
    %p179 = scmp.eq.s32.totalorder %s29, 0
    %p180 = por %p178, %p179
    %s182 = sadd.s32 %s181, 1
    %p185 = scmp.eq.s32.totalorder %s23, 1
    %p186 = scmp.ne.s32.totalorder %s181, %s183
    %p187 = scmp.eq.s32.totalorder %s23, 0
    %p188 = por %p186, %p187
    %p189 = scmp.ne.s32.totalorder %s181, %s183
    %p190 = scmp.eq.s32.totalorder %s28, 1
    %p191 = por %p189, %p190
    %p192 = scmp.ne.s32.totalorder %s183, %s184
    %p193 = scmp.eq.s32.totalorder %s28, 0
    %p194 = por %p192, %p193
    %p195 = scmp.ne.s32.totalorder %s183, %s184
    %p196 = scmp.eq.s32.totalorder %s29, 1
    %p197 = por %p195, %p196
    %p199 = scmp.ne.s32.totalorder %s184, %s198
    %p200 = scmp.eq.s32.totalorder %s29, 0
    %p201 = por %p199, %p200
    %s203 = sadd.s32 %s202, 1
    %p206 = scmp.eq.s32.totalorder %s23, 1
    %p207 = scmp.ne.s32.totalorder %s202, %s204
    %p208 = scmp.eq.s32.totalorder %s23, 0
    %p209 = por %p207, %p208
    %p210 = scmp.ne.s32.totalorder %s202, %s204
    %p211 = scmp.eq.s32.totalorder %s28, 1
    %p212 = por %p210, %p211
    %p213 = scmp.ne.s32.totalorder %s204, %s205
    %p214 = scmp.eq.s32.totalorder %s28, 0
    %p215 = por %p213, %p214
    %p216 = scmp.ne.s32.totalorder %s204, %s205
    %p217 = scmp.eq.s32.totalorder %s29, 1
    %p218 = por %p216, %p217
    %p220 = scmp.ne.s32.totalorder %s205, %s219
    %p221 = scmp.eq.s32.totalorder %s29, 0
    %p222 = por %p220, %p221
    %s223 = ssub.s32 %s30, %s42
    %s224 = ssub.s32 %s31, %s38
    %s225 = sor.u32 %s223, %s224
    %p226 = scmp.eq.s32.totalorder %s225, 0
    %s228 = sadd.s32 %s227, 1
    %s229 = scalar_select %p226, %s227, %s228
    %p232 = pneg %p226
    %p233 = scmp.eq.s32.totalorder %s23, 1
    %p234 = por %p232, %p233
    %p235 = scmp.ne.s32.totalorder %s227, %s230
    %p236 = scmp.eq.s32.totalorder %s23, 0
    %p237 = por %p235, %p236
    %p238 = scmp.ne.s32.totalorder %s227, %s230
    %p239 = scmp.eq.s32.totalorder %s28, 1
    %p240 = por %p238, %p239
    %p241 = scmp.ne.s32.totalorder %s230, %s231
    %p242 = scmp.eq.s32.totalorder %s28, 0
    %p243 = por %p241, %p242
    %p244 = scmp.ne.s32.totalorder %s230, %s231
    %p245 = scmp.eq.s32.totalorder %s29, 1
    %p246 = por %p244, %p245
    %p248 = scmp.ne.s32.totalorder %s231, %s247
    %p249 = scmp.eq.s32.totalorder %s29, 0
    %p250 = por %p248, %p249
    %s251 = ssub.s32 %s30, %s42
    %s252 = ssub.s32 %s31, %s38
    %s253 = sor.u32 %s251, %s252
    %p254 = scmp.eq.s32.totalorder %s253, 0
    %s256 = sadd.s32 %s255, 1
    %s257 = scalar_select %p254, %s255, %s256
    %p260 = pneg %p254
    %p261 = scmp.eq.s32.totalorder %s23, 1
    %p262 = por %p260, %p261
    %p263 = scmp.ne.s32.totalorder %s255, %s258
    %p264 = scmp.eq.s32.totalorder %s23, 0
    %p265 = por %p263, %p264
    %p266 = scmp.ne.s32.totalorder %s255, %s258
    %p267 = scmp.eq.s32.totalorder %s28, 1
    %p268 = por %p266, %p267
    %p269 = scmp.ne.s32.totalorder %s258, %s259
    %p270 = scmp.eq.s32.totalorder %s28, 0
    %p271 = por %p269, %p270
    %p272 = scmp.ne.s32.totalorder %s258, %s259
    %p273 = scmp.eq.s32.totalorder %s29, 1
    %p274 = por %p272, %p273
    %p276 = scmp.ne.s32.totalorder %s259, %s275
    %p277 = scmp.eq.s32.totalorder %s29, 0
    %p278 = por %p276, %p277
    %p279 = scmp.le.s32.totalorder 1, %s23
    %p280 = scmp.lt.s32.totalorder %s23, 3
    %p281 = pnand %p279, %p280
    %p282 = pneg %p281
    // Predicated region
    $region9: #{net_transform_forward.1} parent=5 // pred_check
      _
    $region10: #{net_transform_forward.1} parent=5 // pred_check_branch
      %284 = sbr.rel (%p281) target = $region12
    $region11: #{net_transform_forward.1} parent=5 // pred_region
      %s285 = ssub.s32 %s23, 1
      // Predicated region
      $region13: #{net_transform_forward.1} parent=11 // pred_check
        %p286 = pneg %p110
      $region14: #{net_transform_forward.1} parent=11 // pred_check_branch
        %288 = sbr.rel (%p286) target = $region16
      $region15: #{net_transform_forward.1} parent=11 // pred_region
        _
      $region16: #{net_transform_forward.1} parent=11 // pred_fallthru
        _
      // Predicated region
      $region17: #{net_transform_forward.1} parent=11 // pred_check
        %p289 = pneg %p131
      $region18: #{net_transform_forward.1} parent=11 // pred_check_branch
        %291 = sbr.rel (%p289) target = $region20
      $region19: #{net_transform_forward.1} parent=11 // pred_region
        _
      $region20: #{net_transform_forward.1} parent=11 // pred_fallthru
        _
      // Predicated region
      $region21: #{net_transform_forward.1} parent=11 // pred_check
        %p292 = pneg %p152
      $region22: #{net_transform_forward.1} parent=11 // pred_check_branch
        %294 = sbr.rel (%p292) target = $region24
      $region23: #{net_transform_forward.1} parent=11 // pred_region
        _
      $region24: #{net_transform_forward.1} parent=11 // pred_fallthru
        _
      // Predicated region
      $region25: #{net_transform_forward.1} parent=11 // pred_check
        %p295 = pneg %p173
      $region26: #{net_transform_forward.1} parent=11 // pred_check_branch
        %297 = sbr.rel (%p295) target = $region28
      $region27: #{net_transform_forward.1} parent=11 // pred_region
        _
      $region28: #{net_transform_forward.1} parent=11 // pred_fallthru
        _
      // Predicated region
      $region29: #{net_transform_forward.1} parent=11 // pred_check
        %p298 = pneg %p194
      $region30: #{net_transform_forward.1} parent=11 // pred_check_branch
        %300 = sbr.rel (%p298) target = $region32
      $region31: #{net_transform_forward.1} parent=11 // pred_region
        _
      $region32: #{net_transform_forward.1} parent=11 // pred_fallthru
        _
      // Predicated region
      $region33: #{net_transform_forward.1} parent=11 // pred_check
        %p301 = pneg %p215
      $region34: #{net_transform_forward.1} parent=11 // pred_check_branch
        %303 = sbr.rel (%p301) target = $region36
      $region35: #{net_transform_forward.1} parent=11 // pred_region
        _
      $region36: #{net_transform_forward.1} parent=11 // pred_fallthru
        _
    $region12: #{net_transform_forward.1} parent=5 // pred_fallthru
      _
    %p304 = scmp.lt.s32.totalorder %s23, 2
    // Predicated region
    $region37: #{net_transform_forward.1} parent=5 // pred_check
      %p305 = pneg %p304
    $region38: #{net_transform_forward.1} parent=5 // pred_check_branch
      %307 = sbr.rel (%p305) target = $region40
    $region39: #{net_transform_forward.1} parent=5 // pred_region
      // Predicated region
      $region41: #{net_transform_forward.1} parent=39 // pred_check
        %p308 = pneg %p55
      $region42: #{net_transform_forward.1} parent=39 // pred_check_branch
        %310 = sbr.rel (%p308) target = $region44
      $region43: #{net_transform_forward.1} parent=39 // pred_region
        %p311 = scmp.lt.s32.totalorder %s30, 1
        %s312 = scalar_select %p311, %s30, 1
        %s313 = smul.addr %s312, 8
        %s314 = scalar_lea.vmem %s1, %s313
      $region44: #{net_transform_forward.1} parent=39 // pred_fallthru
        _
      // Predicated region
      $region45: #{net_transform_forward.1} parent=39 // pred_check
        %p315 = pneg %p83
      $region46: #{net_transform_forward.1} parent=39 // pred_check_branch
        %317 = sbr.rel (%p315) target = $region48
      $region47: #{net_transform_forward.1} parent=39 // pred_region
        %p318 = scmp.lt.s32.totalorder %s30, 1
        %s319 = scalar_select %p318, %s30, 1
        %p320 = scmp.lt.s32.totalorder %s31, 0
        %s321 = scalar_select %p320, %s31, 0
        %s322 = sadd.s32 %s321, %s319
        %s323 = smul.addr %s322, 8
        %s324 = scalar_lea.vmem %s2, %s323
      $region48: #{net_transform_forward.1} parent=39 // pred_fallthru
        _
    $region40: #{net_transform_forward.1} parent=5 // pred_fallthru
      _
    %p325 = scmp.le.s32.totalorder 1, %s23
    %p326 = scmp.lt.s32.totalorder %s23, 3
    %p327 = pnand %p325, %p326
    %p328 = pneg %p327
    // Predicated region
    $region49: #{net_transform_forward.1} parent=5 // pred_check
      _
    $region50: #{net_transform_forward.1} parent=5 // pred_check_branch
      %330 = sbr.rel (%p327) target = $region52
    $region51: #{net_transform_forward.1} parent=5 // pred_region
      %s331 = ssub.s32 %s23, 1
      %p332 = scmp.lt.s32.totalorder %s32, 1
      %s333 = scalar_select %p332, %s32, 1
      %s334 = smul.addr %s333, 8
      %s335 = scalar_lea.vmem %s1, %s334
      %p336 = pneg %p61
      %p337 = pneg %p58
      %p338 = scmp.lt.s32.totalorder %s32, 1
      %s339 = scalar_select %p338, %s32, 1
      %p340 = scmp.lt.s32.totalorder %s33, 0
      %s341 = scalar_select %p340, %s33, 0
      %s342 = sadd.s32 %s341, %s339
      %s343 = smul.addr %s342, 8
      %s344 = scalar_lea.vmem %s2, %s343
      %p345 = pneg %p89
      %p346 = pneg %p86
      %p347 = pneg %p110
      %p348 = pneg %p107
      %p349 = pneg %p131
      %p350 = pneg %p128
      %p351 = pneg %p152
      %p352 = pneg %p149
      %p353 = pneg %p173
      %p354 = pneg %p170
      %p355 = pneg %p194
      %p356 = pneg %p191
      %p357 = pneg %p215
      %p358 = pneg %p212
      %p359 = pneg %p243
      %p360 = pneg %p240
      %p361 = scmp.lt.s32.totalorder %s32, 1
      %s362 = scalar_select %p361, %s32, 1
      %p363 = scmp.lt.s32.totalorder %s33, 0
      %s364 = scalar_select %p363, %s33, 0
      %s365 = sadd.s32 %s364, %s362
      %s366 = smul.addr %s365, 8
      %s367 = scalar_lea.vmem %s9, %s366
      %p368 = pneg %p271
      %p369 = pneg %p268
      %p370 = scmp.lt.s32.totalorder %s32, 1
      %s371 = scalar_select %p370, %s32, 1
      %p372 = scmp.lt.s32.totalorder %s33, 0
      %s373 = scalar_select %p372, %s33, 0
      %s374 = sadd.s32 %s373, %s371
      %s375 = smul.addr %s374, 8
      %s376 = scalar_lea.vmem %s10, %s375
      %p377 = scmp.lt.s32.totalorder %s32, 1
      %s378 = scalar_select %p377, %s32, 1
      %s379 = smul.addr %s378, 8
      %s380 = scalar_lea.vmem %s1, %s379
      %p381 = scmp.lt.s32.totalorder %s32, 1
      %s382 = scalar_select %p381, %s32, 1
      %p383 = scmp.lt.s32.totalorder %s33, 0
      %s384 = scalar_select %p383, %s33, 0
      %s385 = sadd.s32 %s384, %s382
      %s386 = smul.addr %s385, 8
      %s387 = scalar_lea.vmem %s2, %s386
      %p388 = scmp.lt.s32.totalorder %s32, 1
      %s389 = scalar_select %p388, %s32, 1
      %p390 = scmp.lt.s32.totalorder %s33, 0
      %s391 = scalar_select %p390, %s33, 0
      %s392 = sadd.s32 %s391, %s389
      %s393 = smul.addr %s392, 8
      %s394 = scalar_lea.vmem %s9, %s393
      %p395 = scmp.lt.s32.totalorder %s32, 1
      %s396 = scalar_select %p395, %s32, 1
      %p397 = scmp.lt.s32.totalorder %s33, 0
      %s398 = scalar_select %p397, %s33, 0
      %s399 = sadd.s32 %s398, %s396
      %s400 = smul.addr %s399, 8
      %s401 = scalar_lea.vmem %s10, %s400
      %s403 = sld [smem:[#allocation5 + %s32]]
      %v404 = vld [vmem:[%s387] sm:$0xff]
      %v405 = vlaneseq
      %v406 = vshrl.u32 %v405, 7
      %v407 = vlaneseq
      %v408 = vand.u32 %v407, 127
      %v409 = vstv %s403
      %vm410 = vcmp.ge.s32.totalorder %v406, %v409
      %vm411 = vcmp.ge.s32.totalorder %v408, %v409
      %vm412 = vmor %vm410, %vm411
      %vm413 = vcmp.eq.s32.totalorder %v406, %v408
      %vm414 = vmor %vm412, %vm413
      %v415 = vpack.c.bf16 %v404, %v404
      %v416 = vld [vmem:[%s5] sm:$0xf]
      %v417 = vld [vmem:[%s5 + $0x4] sm:$0xf]
      %v418 = vld [vmem:[%s6] sm:$0x1]
      %v420 = vlaneseq
      %v421 = vshrl.u32 %v420, 7
      %v422 = vsub.s32 0, %v421
      %v423 = vrot.slane %v418, %v422
      %v427 = vunpack.c.l.b16 %v416
      %v428 = vunpack.c.l.b16 %v417
      %v429 = vpack.c.b16 %v428, %v427
      %vm431 = vcmask 130048
      %v433 = vsel %vm431, %v415, 0
      %435 = vmatprep.subr.bf16.mxu0 0
      %436 = vmatpush1.bf16.msra.mxu0 0
      %437 = vmatprep.subr.bf16.mxu0 0
      %438 = vmatpush1.bf16.msra.mxu0 0
      %439 = vmatprep.subr.bf16.mxu0 0
      %440 = vmatpush1.bf16.msra.mxu0 0
      %441 = vmatprep.subr.bf16.mxu0 0
      %442 = vmatpush1.bf16.msra.mxu0 0
      %443 = vmatprep.subr.bf16.mxu0 0
      %444 = vmatpush1.bf16.msra.mxu0 0
      %445 = vmatprep.subr.bf16.mxu0 0
      %446 = vmatpush1.bf16.msra.mxu0 0
      %447 = vmatprep.subr.bf16.mxu0 0
      %448 = vmatpush1.bf16.msra.mxu0 0
      %449 = vmatprep.subr.bf16.mxu0 0
      %450 = vmatpush1.bf16.msra.mxu0 %v429
      %451 = vmatprep.subr.bf16.mxu0 0
      %452 = vmatpush2.bf16.msra.mxu0 0
      %453 = vmatprep.subr.bf16.mxu0 0
      %454 = vmatpush2.bf16.msra.mxu0 0
      %455 = vmatprep.subr.bf16.mxu0 0
      %456 = vmatpush2.bf16.msra.mxu0 0
      %457 = vmatprep.subr.bf16.mxu0 0
      %458 = vmatpush2.bf16.msra.mxu0 0
      %459 = vmatprep.subr.bf16.mxu0 0
      %460 = vmatpush2.bf16.msra.mxu0 0
      %461 = vmatprep.subr.bf16.mxu0 0
      %462 = vmatpush2.bf16.msra.mxu0 0
      %463 = vmatprep.subr.bf16.mxu0 0
      %464 = vmatpush2.bf16.msra.mxu0 0
      %465 = vmatprep.subr.bf16.mxu0 0
      %466 = vmatpush2.bf16.msra.mxu0 0
      %467 = vmatprep.mubr.bf16.mxu0 0
      %468 = vmatmul.mubr.bf16.gmra.mxu0 %v433
      %v469 = vpop.f32.mrf.mxu0
      %v470 = vadd.f32 %v423, %v469
      %v471 = vpop.f32.mrf.mxu0
      %v472 = vpop.f32.mrf.mxu0
      %v473 = vpop.f32.mrf.mxu0
      %474 = vdwg.mxu0
      %v475 = vmax.f32 %v470, 0.0
      %v476 = vpack.c.bf16 %v475, %v475
      %p477 = scmp.eq.s32.totalorder %s33, 0
      // Predicated region
      $region53: #{net_transform_forward.1} parent=51 // pred_check
        %p478 = pneg %p477
      $region54: #{net_transform_forward.1} parent=51 // pred_check_branch
        %480 = sbr.rel (%p478) target = $region56
      $region55: #{net_transform_forward.1} parent=51 // pred_region
        %v481 = vld [vmem:[%s380] sm:$0xff]
        %v482 = vpack.c.bf16 %v481, %v481
        %v483 = vld [vmem:[%s3] sm:$0xf]
        %v484 = vld [vmem:[%s3 + $0x4] sm:$0xf]
        %v485 = vld [vmem:[%s4] sm:$0x1]
        %v487 = vlaneseq
        %v488 = vshrl.u32 %v487, 7
        %v489 = vsub.s32 0, %v488
        %v490 = vrot.slane %v485, %v489
        %v494 = vunpack.c.l.b16 %v483
        %v495 = vunpack.c.l.b16 %v484
        %v496 = vpack.c.b16 %v495, %v494
        %v499 = vsel %vm431, %v482, 0
        %501 = vmatprep.subr.bf16.mxu0 0
        %502 = vmatpush1.bf16.msra.mxu0 0
        %503 = vmatprep.subr.bf16.mxu0 0
        %504 = vmatpush1.bf16.msra.mxu0 0
        %505 = vmatprep.subr.bf16.mxu0 0
        %506 = vmatpush1.bf16.msra.mxu0 0
        %507 = vmatprep.subr.bf16.mxu0 0
        %508 = vmatpush1.bf16.msra.mxu0 0
        %509 = vmatprep.subr.bf16.mxu0 0
        %510 = vmatpush1.bf16.msra.mxu0 0
        %511 = vmatprep.subr.bf16.mxu0 0
        %512 = vmatpush1.bf16.msra.mxu0 0
        %513 = vmatprep.subr.bf16.mxu0 0
        %514 = vmatpush1.bf16.msra.mxu0 0
        %515 = vmatprep.subr.bf16.mxu0 0
        %516 = vmatpush1.bf16.msra.mxu0 %v496
        %517 = vmatprep.subr.bf16.mxu0 0
        %518 = vmatpush2.bf16.msra.mxu0 0
        %519 = vmatprep.subr.bf16.mxu0 0
        %520 = vmatpush2.bf16.msra.mxu0 0
        %521 = vmatprep.subr.bf16.mxu0 0
        %522 = vmatpush2.bf16.msra.mxu0 0
        %523 = vmatprep.subr.bf16.mxu0 0
        %524 = vmatpush2.bf16.msra.mxu0 0
        %525 = vmatprep.subr.bf16.mxu0 0
        %526 = vmatpush2.bf16.msra.mxu0 0
        %527 = vmatprep.subr.bf16.mxu0 0
        %528 = vmatpush2.bf16.msra.mxu0 0
        %529 = vmatprep.subr.bf16.mxu0 0
        %530 = vmatpush2.bf16.msra.mxu0 0
        %531 = vmatprep.subr.bf16.mxu0 0
        %532 = vmatpush2.bf16.msra.mxu0 0
        %533 = vmatprep.mubr.bf16.mxu0 0
        %534 = vmatmul.mubr.bf16.gmra.mxu0 %v499
        %v535 = vpop.f32.mrf.mxu0
        %v536 = vadd.f32 %v490, %v535
        %v537 = vpop.f32.mrf.mxu0
        %v538 = vpop.f32.mrf.mxu0
        %v539 = vpop.f32.mrf.mxu0
        %540 = vdwg.mxu0
        %v541 = vmax.f32 %v536, 0.0
        %vm542 = vcmask 261120
        %543 = vst.msk [vmem:[#allocation2] sm:$0xff] %vm542, %v541
      $region56: #{net_transform_forward.1} parent=51 // pred_fallthru
        _
      %v544 = vld [vmem:[#allocation2] sm:$0xff]
      %v545 = vpack.c.bf16 %v544, %v544
      %vm546 = vcmask 261120
      %v548 = vsel %vm546, %v476, 0
      %v551 = vsel %vm546, %v545, 0
      %553 = vmatprep.subr.bf16.mxu0 0
      %554 = vmatpush1.bf16.xpose.msra.mxu0 0
      %555 = vmatprep.subr.bf16.mxu0 0
      %556 = vmatpush1.bf16.xpose.msra.mxu0 0
      %557 = vmatprep.subr.bf16.mxu0 0
      %558 = vmatpush1.bf16.xpose.msra.mxu0 0
      %559 = vmatprep.subr.bf16.mxu0 0
      %560 = vmatpush1.bf16.xpose.msra.mxu0 0
      %561 = vmatprep.subr.bf16.mxu0 0
      %562 = vmatpush1.bf16.xpose.msra.mxu0 0
      %563 = vmatprep.subr.bf16.mxu0 0
      %564 = vmatpush1.bf16.xpose.msra.mxu0 0
      %565 = vmatprep.subr.bf16.mxu0 0
      %566 = vmatpush1.bf16.xpose.msra.mxu0 0
      %567 = vmatprep.subr.bf16.mxu0 0
      %568 = vmatpush1.bf16.xpose.msra.mxu0 %v551
      %569 = vmatprep.subr.bf16.mxu0 0
      %570 = vmatpush2.bf16.xpose.msra.mxu0 0
      %571 = vmatprep.subr.bf16.mxu0 0
      %572 = vmatpush2.bf16.xpose.msra.mxu0 0
      %573 = vmatprep.subr.bf16.mxu0 0
      %574 = vmatpush2.bf16.xpose.msra.mxu0 0
      %575 = vmatprep.subr.bf16.mxu0 0
      %576 = vmatpush2.bf16.xpose.msra.mxu0 0
      %577 = vmatprep.subr.bf16.mxu0 0
      %578 = vmatpush2.bf16.xpose.msra.mxu0 0
      %579 = vmatprep.subr.bf16.mxu0 0
      %580 = vmatpush2.bf16.xpose.msra.mxu0 0
      %581 = vmatprep.subr.bf16.mxu0 0
      %582 = vmatpush2.bf16.xpose.msra.mxu0 0
      %583 = vmatprep.subr.bf16.mxu0 0
      %584 = vmatpush2.bf16.xpose.msra.mxu0 0
      %585 = vmatprep.mubr.bf16.mxu0 0
      %586 = vmatmul.mubr.bf16.gmra.mxu0 %v548
      %v587 = vpop.f32.mrf.mxu0
      %v588 = vadd.f32 0.0, %v587
      %v589 = vpop.f32.mrf.mxu0
      %v590 = vpop.f32.mrf.mxu0
      %v591 = vpop.f32.mrf.mxu0
      %592 = vdwg.mxu0
      %v593 = vmul.f32 %v588, 0.17677669
      %v594 = vsel %vm414, -3.4028235e+38, %v593
      %vm595 = vcmask 64512
      %v596 = vsel %vm595, %v594, -inf
      %597 = vmax.xlane.f32.xlu0 %v596
      %v598 = vpop.xlane.xlu0 %597
      %v599 = vsub.f32 %v594, %v598
      %v600 = vmul.f32 %v599, 1.442695
      %v601 = vpow.pop %v600
      %v602 = vsel %vm595, %v601, 0.0
      %603 = vadd.xlane.f32.xlu0 %v602
      %v604 = vpop.xlane.xlu0 %603
      %v605 = vrcp.pop %v604
      %v606 = vmul.f32 %v601, %v605
      %v607 = vsel %vm414, 0.0, %v606
      %v608 = vpack.c.bf16 %v607, %v607
      %v610 = vsel %vm595, %v608, 0
      %vm612 = vcmask 1043456
      %v613 = vsel %vm612, %v545, 0
      %615 = vmatprep.subr.bf16.mxu0 0
      %616 = vmatpush1.bf16.msra.mxu0 0
      %617 = vmatprep.subr.bf16.mxu0 0
      %618 = vmatpush1.bf16.msra.mxu0 0
      %619 = vmatprep.subr.bf16.mxu0 0
      %620 = vmatpush1.bf16.msra.mxu0 0
      %621 = vmatprep.subr.bf16.mxu0 0
      %622 = vmatpush1.bf16.msra.mxu0 0
      %623 = vmatprep.subr.bf16.mxu0 0
      %624 = vmatpush1.bf16.msra.mxu0 0
      %625 = vmatprep.subr.bf16.mxu0 0
      %626 = vmatpush1.bf16.msra.mxu0 0
      %627 = vmatprep.subr.bf16.mxu0 0
      %628 = vmatpush1.bf16.msra.mxu0 0
      %629 = vmatprep.subr.bf16.mxu0 0
      %630 = vmatpush1.bf16.msra.mxu0 %v613
      %631 = vmatprep.subr.bf16.mxu0 0
      %632 = vmatpush2.bf16.msra.mxu0 0
      %633 = vmatprep.subr.bf16.mxu0 0
      %634 = vmatpush2.bf16.msra.mxu0 0
      %635 = vmatprep.subr.bf16.mxu0 0
      %636 = vmatpush2.bf16.msra.mxu0 0
      %637 = vmatprep.subr.bf16.mxu0 0
      %638 = vmatpush2.bf16.msra.mxu0 0
      %639 = vmatprep.subr.bf16.mxu0 0
      %640 = vmatpush2.bf16.msra.mxu0 0
      %641 = vmatprep.subr.bf16.mxu0 0
      %642 = vmatpush2.bf16.msra.mxu0 0
      %643 = vmatprep.subr.bf16.mxu0 0
      %644 = vmatpush2.bf16.msra.mxu0 0
      %645 = vmatprep.subr.bf16.mxu0 0
      %646 = vmatpush2.bf16.msra.mxu0 0
      %647 = vmatprep.mubr.bf16.mxu0 0
      %648 = vmatmul.mubr.bf16.gmra.mxu0 %v610
      %v649 = vpop.f32.mrf.mxu0
      %v650 = vadd.f32 0.0, %v649
      %v651 = vpop.f32.mrf.mxu0
      %v652 = vpop.f32.mrf.mxu0
      %v653 = vpop.f32.mrf.mxu0
      %654 = vdwg.mxu0
      %v655 = vpack.c.bf16 %v650, %v650
      %v656 = vld [vmem:[%s7] sm:$0xf]
      %v657 = vld [vmem:[%s7 + $0x4] sm:$0xf]
      %v658 = vld [vmem:[%s7 + $0x8] sm:$0xf]
      %v659 = vld [vmem:[%s7 + $0xc] sm:$0xf]
      %v660 = vld [vmem:[%s8] sm:$0x1]
      %v662 = vlaneseq
      %v663 = vshrl.u32 %v662, 7
      %v664 = vsub.s32 0, %v663
      %v665 = vrot.slane %v660, %v664
      %v671 = vunpack.c.l.b16 %v656
      %v672 = vunpack.c.l.b16 %v657
      %v673 = vunpack.c.l.b16 %v658
      %v674 = vunpack.c.l.b16 %v659
      %v675 = vpack.c.b16 %v672, %v671
      %v676 = vpack.c.b16 %v674, %v673
      %v680 = vsel %vm546, %v655, 0
      %682 = vmatprep.subr.bf16.mxu0 0
      %683 = vmatpush1.bf16.msra.mxu0 0
      %684 = vmatprep.subr.bf16.mxu0 0
      %685 = vmatpush1.bf16.msra.mxu0 0
      %686 = vmatprep.subr.bf16.mxu0 0
      %687 = vmatpush1.bf16.msra.mxu0 0
      %688 = vmatprep.subr.bf16.mxu0 0
      %689 = vmatpush1.bf16.msra.mxu0 0
      %690 = vmatprep.subr.bf16.mxu0 0
      %691 = vmatpush1.bf16.msra.mxu0 0
      %692 = vmatprep.subr.bf16.mxu0 0
      %693 = vmatpush1.bf16.msra.mxu0 0
      %694 = vmatprep.subr.bf16.mxu0 0
      %695 = vmatpush1.bf16.msra.mxu0 %v676
      %696 = vmatprep.subr.bf16.mxu0 0
      %697 = vmatpush1.bf16.msra.mxu0 %v675
      %698 = vmatprep.subr.bf16.mxu0 0
      %699 = vmatpush2.bf16.msra.mxu0 0
      %700 = vmatprep.subr.bf16.mxu0 0
      %701 = vmatpush2.bf16.msra.mxu0 0
      %702 = vmatprep.subr.bf16.mxu0 0
      %703 = vmatpush2.bf16.msra.mxu0 0
      %704 = vmatprep.subr.bf16.mxu0 0
      %705 = vmatpush2.bf16.msra.mxu0 0
      %706 = vmatprep.subr.bf16.mxu0 0
      %707 = vmatpush2.bf16.msra.mxu0 0
      %708 = vmatprep.subr.bf16.mxu0 0
      %709 = vmatpush2.bf16.msra.mxu0 0
      %710 = vmatprep.subr.bf16.mxu0 0
      %711 = vmatpush2.bf16.msra.mxu0 0
      %712 = vmatprep.subr.bf16.mxu0 0
      %713 = vmatpush2.bf16.msra.mxu0 0
      %714 = vmatprep.mubr.bf16.mxu0 0
      %715 = vmatmul.mubr.bf16.gmra.mxu0 %v680
      %v716 = vpop.f32.mrf.mxu0
      %v717 = vadd.f32 %v665, %v716
      %v718 = vpop.f32.mrf.mxu0
      %v719 = vpop.f32.mrf.mxu0
      %v720 = vpop.f32.mrf.mxu0
      %721 = vdwg.mxu0
      %v722 = vsub.f32 %v717, %v404
      %v723 = vmul.f32 %v722, %v722
      %v724 = vsel %vm431, %v723, 0.0
      %725 = vadd.xlane.f32.xlu0 %v724
      %v726 = vpop.xlane.xlu0 %725
      %v727 = vsel %vm410, 0.0, %v726
      %vm728 = vcmask 7168
      %729 = vst.msk [vmem:[%s394] sm:$0xff] %vm728, %v727
      // Predicated region
      $region57: #{net_transform_forward.1} parent=51 // pred_check
        %p730 = pneg %p477
      $region58: #{net_transform_forward.1} parent=51 // pred_check_branch
        %732 = sbr.rel (%p730) target = $region60
      $region59: #{net_transform_forward.1} parent=51 // pred_region
        %v733 = vadd.s32 %v406, 1
        %vm734 = vcmp.eq.s32.totalorder %v408, %v733
        %v735 = vsel %vm734, %v607, 0.0
        %v736 = vsel %vm595, %v735, 0.0
        %v737 = vrot.slane %v736, 4
        %v738 = vadd.f32 %v736, %v737
        %v739 = vrot.slane %v738, 2
        %v740 = vadd.f32 %v738, %v739
        %v741 = vrot.slane %v740, 1
        %v742 = vadd.f32 %v740, %v741
        %vm743 = vcmp.eq.s32.totalorder %v408, 0
        %v744 = vsel %vm743, 1.0, %v742
        %vm745 = vcmp.lt.s32.totalorder %v408, %v406
        %v746 = vsel %vm745, %v744, 1.0
        %748 = vrot.lane.b32.xlu0 %v746, 127
        %v749 = vpop.permute.xlu0 %748
        %vm751 = vcmask 56320
        %v752 = vsel %vm751, %v749, 1.0
        %v753 = vmul.f32 %v746, %v752
        %755 = vrot.lane.b32.xlu0 %v753, 126
        %v756 = vpop.permute.xlu0 %755
        %vm758 = vcmask 48128
        %v759 = vsel %vm758, %v756, 1.0
        %v760 = vmul.f32 %v753, %v759
        %762 = vrot.lane.b32.xlu0 %v760, 124
        %v763 = vpop.permute.xlu0 %762
        %vm765 = vcmask 31744
        %v766 = vsel %vm765, %v763, 1.0
        %v767 = vmul.f32 %v760, %v766
        %vm768 = vcmp.le.s32.totalorder %v408, %v406
        %v769 = vsel %vm768, %v767, 0.0
        %770 = vst.msk [vmem:[#allocation3] sm:$0xff] %vm595, %v769
      $region60: #{net_transform_forward.1} parent=51 // pred_fallthru
        _
      %771 = vmatprep.subr.bf16.mxu0 0
      %772 = vmatpush1.bf16.xpose.msra.mxu0 0
      %773 = vmatprep.subr.bf16.mxu0 0
      %774 = vmatpush1.bf16.xpose.msra.mxu0 0
      %775 = vmatprep.subr.bf16.mxu0 0
      %776 = vmatpush1.bf16.xpose.msra.mxu0 0
      %777 = vmatprep.subr.bf16.mxu0 0
      %778 = vmatpush1.bf16.xpose.msra.mxu0 0
      %779 = vmatprep.subr.bf16.mxu0 0
      %780 = vmatpush1.bf16.xpose.msra.mxu0 0
      %781 = vmatprep.subr.bf16.mxu0 0
      %782 = vmatpush1.bf16.xpose.msra.mxu0 0
      %783 = vmatprep.subr.bf16.mxu0 0
      %784 = vmatpush1.bf16.xpose.msra.mxu0 0
      %785 = vmatprep.subr.bf16.mxu0 0
      %786 = vmatpush1.bf16.xpose.msra.mxu0 %v548
      %787 = vmatprep.subr.bf16.mxu0 0
      %788 = vmatpush2.bf16.xpose.msra.mxu0 0
      %789 = vmatprep.subr.bf16.mxu0 0
      %790 = vmatpush2.bf16.xpose.msra.mxu0 0
      %791 = vmatprep.subr.bf16.mxu0 0
      %792 = vmatpush2.bf16.xpose.msra.mxu0 0
      %793 = vmatprep.subr.bf16.mxu0 0
      %794 = vmatpush2.bf16.xpose.msra.mxu0 0
      %795 = vmatprep.subr.bf16.mxu0 0
      %796 = vmatpush2.bf16.xpose.msra.mxu0 0
      %797 = vmatprep.subr.bf16.mxu0 0
      %798 = vmatpush2.bf16.xpose.msra.mxu0 0
      %799 = vmatprep.subr.bf16.mxu0 0
      %800 = vmatpush2.bf16.xpose.msra.mxu0 0
      %801 = vmatprep.subr.bf16.mxu0 0
      %802 = vmatpush2.bf16.xpose.msra.mxu0 0
      %803 = vmatprep.mubr.bf16.mxu0 0
      %804 = vmatmul.mubr.bf16.gmra.mxu0 %v548
      %v805 = vpop.f32.mrf.mxu0
      %v806 = vadd.f32 0.0, %v805
      %v807 = vpop.f32.mrf.mxu0
      %v808 = vpop.f32.mrf.mxu0
      %v809 = vpop.f32.mrf.mxu0
      %810 = vdwg.mxu0
      %vm811 = vcmp.le.s32.totalorder %v408, %v406
      %v812 = vsel %vm811, %v806, 0.0
      %v813 = vld [vmem:[#allocation3] sm:$0xff]
      %v814 = vmax.f32 %v812, 0.0
      %v815 = vmul.f32 %v812, %v813
      %v816 = vsub.f32 %v814, %v815
      %v817 = vand.u32 2147483647, %v812
      %v818 = vsub.f32 0.0, %v817
      %v819 = vmul.f32 %v818, 1.442695
      %v820 = vpow.pop %v819
      %v821 = vadd.f32 %v820, 1.0
      %v822 = vlog2.pop %v821
      %v823 = vmul.f32 %v822, 0.6931472
      %v824 = vmul.f32 -0.5, %v820
      %v825 = vadd.f32 %v824, 1.0
      %v826 = vmul.f32 %v825, %v820
      %v827 = vand.u32 2147483647, %v820
      %vm828 = vcmp.lt.f32.partialorder %v827, 0.0004427343
      %v829 = vsel %vm828, %v826, %v823
      %v830 = vadd.f32 %v816, %v829
      %v831 = vsel %vm412, 0.0, %v830
      %v832 = vsel %vm595, %v831, 0.0
      %833 = vadd.xlane.f32.xlu0 %v832
      %v834 = vpop.xlane.xlu0 %833
      %835 = vst.msk [vmem:[%s401] sm:$0xff] %vm728, %v834
      %p836 = scmp.lt.s32.totalorder %s32, 1
      %s837 = scalar_select %p836, %s32, 1
      %p838 = scmp.lt.s32.totalorder %s33, 0
      %s839 = scalar_select %p838, %s33, 0
      %s840 = sadd.s32 %s839, %s837
      %s841 = smul.addr %s840, 8
      %s842 = scalar_lea.vmem %s9, %s841
      %p843 = scmp.lt.s32.totalorder %s32, 1
      %s844 = scalar_select %p843, %s32, 1
      %p845 = scmp.lt.s32.totalorder %s33, 0
      %s846 = scalar_select %p845, %s33, 0
      %s847 = sadd.s32 %s846, %s844
      %s848 = smul.addr %s847, 8
      %s849 = scalar_lea.vmem %s10, %s848
      // Predicated region
      $region61: #{net_transform_forward.1} parent=51 // pred_check
        %p850 = pneg %p240
      $region62: #{net_transform_forward.1} parent=51 // pred_check_branch
        %852 = sbr.rel (%p850) target = $region64
      $region63: #{net_transform_forward.1} parent=51 // pred_region
        _
      $region64: #{net_transform_forward.1} parent=51 // pred_fallthru
        _
      // Predicated region
      $region65: #{net_transform_forward.1} parent=51 // pred_check
        %p853 = pneg %p268
      $region66: #{net_transform_forward.1} parent=51 // pred_check_branch
        %855 = sbr.rel (%p853) target = $region68
      $region67: #{net_transform_forward.1} parent=51 // pred_region
        _
      $region68: #{net_transform_forward.1} parent=51 // pred_fallthru
        _
    $region52: #{net_transform_forward.1} parent=5 // pred_fallthru
      _
    %p856 = scmp.le.s32.totalorder 2, %s23
    // Predicated region
    $region69: #{net_transform_forward.1} parent=5 // pred_check
      %p857 = pneg %p856
    $region70: #{net_transform_forward.1} parent=5 // pred_check_branch
      %859 = sbr.rel (%p857) target = $region72
    $region71: #{net_transform_forward.1} parent=5 // pred_region
      %s860 = ssub.s32 %s23, 2
      // Predicated region
      $region73: #{net_transform_forward.1} parent=71 // pred_check
        %p861 = pneg %p246
      $region74: #{net_transform_forward.1} parent=71 // pred_check_branch
        %863 = sbr.rel (%p861) target = $region76
      $region75: #{net_transform_forward.1} parent=71 // pred_region
        %p864 = scmp.lt.s32.totalorder %s34, 1
        %s865 = scalar_select %p864, %s34, 1
        %p866 = scmp.lt.s32.totalorder %s35, 0
        %s867 = scalar_select %p866, %s35, 0
        %s868 = sadd.s32 %s867, %s865
        %s869 = smul.addr %s868, 8
        %s870 = scalar_lea.vmem %s9, %s869
      $region76: #{net_transform_forward.1} parent=71 // pred_fallthru
        _
      // Predicated region
      $region77: #{net_transform_forward.1} parent=71 // pred_check
        %p871 = pneg %p274
      $region78: #{net_transform_forward.1} parent=71 // pred_check_branch
        %873 = sbr.rel (%p871) target = $region80
      $region79: #{net_transform_forward.1} parent=71 // pred_region
        %p874 = scmp.lt.s32.totalorder %s34, 1
        %s875 = scalar_select %p874, %s34, 1
        %p876 = scmp.lt.s32.totalorder %s35, 0
        %s877 = scalar_select %p876, %s35, 0
        %s878 = sadd.s32 %s877, %s875
        %s879 = smul.addr %s878, 8
        %s880 = scalar_lea.vmem %s10, %s879
      $region80: #{net_transform_forward.1} parent=71 // pred_fallthru
        _
    $region72: #{net_transform_forward.1} parent=5 // pred_fallthru
      _
  $region6: #{net_transform_forward.1} parent=0 // loop_footer
    %s27 = sadd.s32 1, %s23
  $region7: #{net_transform_forward.1} parent=0 // loop_footer_branch
    %22 = sbr.rel target = $region3
  $region8: #{net_transform_forward.1} parent=0 // loop_exit
    _

</llo_original>
